<compile_context>
chip_gen: v7x
topology: tpu7x:2x2x1
jax: 0.10.0
libtpu: 0.0.40
codegen_flags: <defaults>
</compile_context>

<pallas_src>
import jax
import jax.numpy as jnp
from jax.experimental import pallas as pl
from jax.experimental.pallas import tpu as pltpu


# ------------------------------ fused kernel ------------------------------- #

def make_conrnn_kernel(n_layers, emb_dim, hid_dim):
    """Build the fused multi-token ConRNN kernel for static (L, E, H)."""
    L, E, H = n_layers, emb_dim, hid_dim

    def lstm_update(gates, c_prev):
        # Columns pre-reordered to (i, f, o, g): one sigmoid pass + one tanh pass.
        sg = jax.nn.sigmoid(gates[:, 0:3 * H])
        i_g = sg[:, 0:H]
        f_g = sg[:, H:2 * H]
        o_g = sg[:, 2 * H:3 * H]
        g_g = jnp.tanh(gates[:, 3 * H:4 * H])
        c_new = f_g * c_prev + i_g * g_g
        h_new = o_g * jnp.tanh(c_new)
        return h_new, c_new

    def kernel(x_ref, ctx_ref, h0_ref, c0_ref, wg_ref, bg_ref, wfc_ref, bfc_ref,
               outpred_ref, h_ref, c_ref):
        t = pl.program_id(0)

        # Prime the carried recurrent state (output refs are VMEM-resident across
        # the whole "arbitrary" T axis -> they act as the accumulator/state).
        @pl.when(t == 0)
        def _():
            h_ref[...] = h0_ref[...]
            c_ref[...] = c0_ref[...]

        x = x_ref[0]                      # (B, E) f32, current token
        ctx = ctx_ref[...]                # (B, H) f32, fixed context
        x_b = x.astype(jnp.bfloat16)
        ctx_b = ctx.astype(jnp.bfloat16)

        # ---- layer 0: single fused K = E+2H dot against the gate slab -------
        lin0 = jnp.concatenate(
            [x_b, ctx_b, h_ref[0].astype(jnp.bfloat16)], axis=1)      # (B, E+2H)
        gates = (jnp.dot(lin0, wg_ref[pl.ds(0, E + 2 * H), :],
                         preferred_element_type=jnp.float32)
                 + bg_ref[0])
        h_new, c_new = lstm_update(gates, c_ref[0])
        h_ref[0] = h_new
        c_ref[0] = c_new
        layer_in = h_new

        # ---- layers 1 .. L-1: single fused K = 2H dot per layer --------------
        # TODO(synk): nn.LSTM inter-layer dropout is training-only; eval semantics here.
        for l in range(1, L):
            off = E + 2 * H + 2 * H * (l - 1)
            lin = jnp.concatenate(
                [layer_in.astype(jnp.bfloat16),
                 h_ref[l].astype(jnp.bfloat16)], axis=1)              # (B, 2H)
            gates = (jnp.dot(lin, wg_ref[pl.ds(off, 2 * H), :],
                             preferred_element_type=jnp.float32)
                     + bg_ref[l])
            h_new, c_new = lstm_update(gates, c_ref[l])
            h_ref[l] = h_new
            c_ref[l] = c_new
            layer_in = h_new

        # ---- fc_out on [x ; output ; context]: single K = E+2H dot -----------
        out_con = jnp.concatenate(
            [x_b, layer_in.astype(jnp.bfloat16), ctx_b], axis=1)       # (B, E+2H)
        logits = (jnp.dot(out_con, wfc_ref[...],
                          preferred_element_type=jnp.float32)
                  + bfc_ref[...])

        # Packed per-step output slab: [output(H) | prediction(V)] -> one store.
        outpred_ref[0] = jnp.concatenate([layer_in, logits], axis=-1)

    return kernel


# ------------------------------ forward wrapper ----------------------------- #

def conrnn_forward(kparams, inp, hidden, cell, context, loss='ml'):
    """
    inp:     (T, B, E)  token sequence (T=1 == the PyTorch module's forward)
    context: (1, B, H)  fixed context vector
    hidden:  (L, B, H)  cell: (L, B, H)
    returns (output[T,B,H], prediction[T,B,V], hidden, cell) for loss='ml'.
    """
    T, B, E = inp.shape
    L, _, H = hidden.shape
    V = kparams['b_fc'].shape[-1]
    ctx = context[0]                       # (B, H)

    w_gates = kparams['w_gates']           # (E+2H + (L-1)*2H, 4H) bf16
    b_gates = kparams['b_gates']           # (L, 1, 4H) f32
    w_fc = kparams['w_fc']                 # (E+2H, V) bf16
    b_fc = kparams['b_fc']                 # (1, V) f32

    in_specs = [
        pl.BlockSpec((1, B, E), lambda t: (t, 0, 0)),            # token t
        pl.BlockSpec((B, H), lambda t: (0, 0)),                  # context (resident)
        pl.BlockSpec((L, B, H), lambda t: (0, 0, 0)),            # initial hidden
        pl.BlockSpec((L, B, H), lambda t: (0, 0, 0)),            # initial cell
        pl.BlockSpec(w_gates.shape, lambda t: (0, 0)),           # gate weight slab
        pl.BlockSpec(b_gates.shape, lambda t: (0, 0, 0)),        # gate bias slab
        pl.BlockSpec(w_fc.shape, lambda t: (0, 0)),              # fc weight slab
        pl.BlockSpec(b_fc.shape, lambda t: (0, 0)),              # fc bias
    ]
    out_specs = (
        pl.BlockSpec((1, B, H + V), lambda t: (t, 0, 0)),        # [output | logits] per step
        pl.BlockSpec((L, B, H), lambda t: (0, 0, 0)),            # final hidden (resident)
        pl.BlockSpec((L, B, H), lambda t: (0, 0, 0)),            # final cell (resident)
    )
    out_shapes = (
        jax.ShapeDtypeStruct((T, B, H + V), jnp.float32),
        jax.ShapeDtypeStruct((L, B, H), jnp.float32),
        jax.ShapeDtypeStruct((L, B, H), jnp.float32),
    )

    flops = T * B * (2 * (E + 2 * H) * 4 * H
                     + (L - 1) * 2 * (2 * H) * 4 * H
                     + 2 * (E + 2 * H) * V)
    transcendentals = T * B * L * 5 * H
    bytes_accessed = (w_gates.size * 2 + w_fc.size * 2
                      + b_gates.size * 4 + b_fc.size * 4
                      + (inp.size + ctx.size) * 4
                      + 2 * (hidden.size + cell.size) * 4
                      + T * B * (H + V) * 4)

    out_slab, hidden_out, cell_out = pl.pallas_call(
        make_conrnn_kernel(L, E, H),
        out_shape=out_shapes,
        grid=(T,),
        in_specs=in_specs,
        out_specs=out_specs,
        input_output_aliases={2: 1, 3: 2},      # hidden -> hidden_out, cell -> cell_out
        compiler_params=pltpu.CompilerParams(
            dimension_semantics=("arbitrary",),
            vmem_limit_bytes=16 * 1024 * 1024),
        cost_estimate=pl.CostEstimate(
            flops=flops, transcendentals=transcendentals,
            bytes_accessed=bytes_accessed),
    )(inp, ctx, hidden, cell, w_gates, b_gates, w_fc, b_fc)

    output = out_slab[:, :, :H]
    prediction = out_slab[:, :, H:]
    if loss == 'sl':
        return prediction, hidden_out, cell_out
    return output, prediction, hidden_out, cell_out


# ----------------------------- Param init (synthetic) ----------------------- #

def init_params(key, vocab_size, emb_dim, hid_dim, n_layers):
    """Deterministic synthetic init matching nn.LSTM / nn.Linear shapes."""
    stdv = 1.0 / (hid_dim ** 0.5)
    keys = jax.random.split(key, 4 * n_layers + 2)
    w_ih, w_hh, b_ih, b_hh = [], [], [], []
    ki = 0
    for l in range(n_layers):
        in_dim = emb_dim + hid_dim if l == 0 else hid_dim
        w_ih.append(jax.random.uniform(keys[ki], (4 * hid_dim, in_dim),
                                       jnp.float32, -stdv, stdv)); ki += 1
        w_hh.append(jax.random.uniform(keys[ki], (4 * hid_dim, hid_dim),
                                       jnp.float32, -stdv, stdv)); ki += 1
        b_ih.append(jax.random.uniform(keys[ki], (4 * hid_dim,),
                                       jnp.float32, -stdv, stdv)); ki += 1
        b_hh.append(jax.random.uniform(keys[ki], (4 * hid_dim,),
                                       jnp.float32, -stdv, stdv)); ki += 1
    fc_in = emb_dim + 2 * hid_dim
    fc_std = 1.0 / (fc_in ** 0.5)
    fc_w = jax.random.uniform(keys[ki], (vocab_size, fc_in),
                              jnp.float32, -fc_std, fc_std); ki += 1
    fc_b = jax.random.uniform(keys[ki], (vocab_size,),
                              jnp.float32, -fc_std, fc_std)
    return dict(w_ih=w_ih, w_hh=w_hh, b_ih=b_ih, b_hh=b_hh, fc_w=fc_w, fc_b=fc_b)


def prepare_params(params, emb_dim, hid_dim):
    """Hoist all transposes / bias sums / gate reorders / slab packing / bf16 casts."""
    E, H = emb_dim, hid_dim
    L = len(params['w_ih'])

    def reorder_ifog_to_ifog2(w):   # PyTorch (i,f,g,o) -> kernel (i,f,o,g) along last axis
        i, f, g, o = jnp.split(w, 4, axis=-1)
        return jnp.concatenate([i, f, o, g], axis=-1)

    rows, biases = [], []
    # layer 0: input order [x ; ctx ; h_prev] (matches cat(input, context) + recurrent)
    w0 = jnp.concatenate([params['w_ih'][0].T, params['w_hh'][0].T], axis=0)   # (E+2H, 4H)
    rows.append(reorder_ifog_to_ifog2(w0))
    biases.append(reorder_ifog_to_ifog2(params['b_ih'][0] + params['b_hh'][0])[None, :])
    # layers 1..L-1: input order [h_below ; h_prev]
    for l in range(1, L):
        wl = jnp.concatenate([params['w_ih'][l].T, params['w_hh'][l].T], axis=0)  # (2H, 4H)
        rows.append(reorder_ifog_to_ifog2(wl))
        biases.append(reorder_ifog_to_ifog2(params['b_ih'][l] + params['b_hh'][l])[None, :])

    w_gates = jnp.concatenate(rows, axis=0).astype(jnp.bfloat16)   # one contiguous slab
    b_gates = jnp.stack(biases, axis=0)                            # (L, 1, 4H) f32
    w_fc = params['fc_w'].T.astype(jnp.bfloat16)                   # (E+2H, V), rows = [x ; out ; ctx]
    b_fc = params['fc_b'][None, :]                                 # (1, V) f32
    return dict(w_gates=w_gates, b_gates=b_gates, w_fc=w_fc, b_fc=b_fc)


# ----------------------------- Pure-JAX reference --------------------------- #

def conrnn_reference(params, inp, hidden, cell, context):
    """Iterates the PyTorch module's single-step forward over the T tokens (f32)."""
    ctx = context[0]
    H = hidden.shape[-1]
    L = len(params['w_ih'])
    h, c = hidden, cell
    outs, preds = [], []
    for t in range(inp.shape[0]):
        x = inp[t]
        layer_in = jnp.concatenate([x, ctx], axis=1)
        new_h, new_c = [], []
        for l in range(L):
            gates = (layer_in @ params['w_ih'][l].T + h[l] @ params['w_hh'][l].T
                     + params['b_ih'][l] + params['b_hh'][l])
            i_g = jax.nn.sigmoid(gates[:, :H])
            f_g = jax.nn.sigmoid(gates[:, H:2 * H])
            g_g = jnp.tanh(gates[:, 2 * H:3 * H])
            o_g = jax.nn.sigmoid(gates[:, 3 * H:])
            c_new = f_g * c[l] + i_g * g_g
            h_new = o_g * jnp.tanh(c_new)
            new_h.append(h_new)
            new_c.append(c_new)
            layer_in = h_new
        h, c = jnp.stack(new_h), jnp.stack(new_c)
        out_con = jnp.concatenate([x, layer_in, ctx], axis=1)
        preds.append(out_con @ params['fc_w'].T + params['fc_b'])
        outs.append(layer_in)
    return jnp.stack(outs), jnp.stack(preds), h, c


# ------------------------------------ main ---------------------------------- #

if __name__ == "__main__":
    vocab_size, emb_dim, hid_dim, n_layers, batch, seq = 64, 32, 32, 2, 2, 4

    root = jax.random.PRNGKey(0)
    k_inp, k_hid, k_cel, k_ctx, k_par = jax.random.split(root, 5)

    params = init_params(k_par, vocab_size, emb_dim, hid_dim, n_layers)
    kparams = prepare_params(params, emb_dim, hid_dim)

    inp = jax.random.normal(k_inp, (seq, batch, emb_dim), jnp.float32)
    hidden = jax.random.normal(k_hid, (n_layers, batch, hid_dim), jnp.float32)
    cell = jax.random.normal(k_cel, (n_layers, batch, hid_dim), jnp.float32)
    context = jax.random.normal(k_ctx, (1, batch, hid_dim), jnp.float32)

    # Reference computed (and finished) before the kernel donates hidden/cell.
    ref = conrnn_reference(params, inp, hidden, cell, context)
    jax.block_until_ready(ref)

    conrnn_step = jax.jit(conrnn_forward, static_argnames=('loss',),
                          donate_argnums=(2, 3))
    output, prediction, hidden_out, cell_out = conrnn_step(
        kparams, inp, hidden, cell, context, loss='ml')
    jax.block_until_ready((output, prediction, hidden_out, cell_out))

    assert output.shape == (seq, batch, hid_dim)
    assert prediction.shape == (seq, batch, vocab_size)
    assert hidden_out.shape == (n_layers, batch, hid_dim)
    assert cell_out.shape == (n_layers, batch, hid_dim)

    # bf16 MXU inputs (f32 accumulation) vs. the pure-f32 reference: expected
    # absolute error is O(1e-2) over a multi-step recurrence, hence the tolerance.
    r_out, r_pred, r_hid, r_cell = ref
    assert jnp.allclose(output, r_out, atol=5e-2, rtol=5e-2)
    assert jnp.allclose(prediction, r_pred, atol=5e-2, rtol=5e-2)
    assert jnp.allclose(hidden_out, r_hid, atol=5e-2, rtol=5e-2)
    assert jnp.allclose(cell_out, r_cell, atol=5e-2, rtol=5e-2)

    print("KERNEL_OK")
</pallas_src>

<mosaic_0001>
module attributes {stable_mosaic.version = 11 : i64} {
  func.func @kernel(%arg0: i32, %arg1: memref<1x2x32xf32, #tpu.memory_space<vmem>>, %arg2: memref<2x32xf32, #tpu.memory_space<vmem>>, %arg3: memref<2x2x32xf32, #tpu.memory_space<vmem>>, %arg4: memref<2x2x32xf32, #tpu.memory_space<vmem>>, %arg5: memref<160x128xbf16, #tpu.memory_space<vmem>>, %arg6: memref<2x1x128xf32, #tpu.memory_space<vmem>>, %arg7: memref<96x64xbf16, #tpu.memory_space<vmem>>, %arg8: memref<1x64xf32, #tpu.memory_space<vmem>>, %arg9: memref<1x2x96xf32, #tpu.memory_space<vmem>>, %arg10: memref<2x2x32xf32, #tpu.memory_space<vmem>>, %arg11: memref<2x2x32xf32, #tpu.memory_space<vmem>>) attributes {dimension_semantics = [#tpu.dimension_semantics<arbitrary>], iteration_bounds = array<i64: 4>, scalar_prefetch = 0 : i64, scratch_operands = 0 : i64, tpu.core_type = #tpu.core_type<tc>, window_params = [{transform_indices = @transform_0, window_bounds = array<i64: 1, 2, 32>}, {pipeline_mode = #tpu.pipeline_mode<synchronous>, transform_indices = @transform_1, window_bounds = array<i64: 2, 32>}, {pipeline_mode = #tpu.pipeline_mode<synchronous>, transform_indices = @transform_2, window_bounds = array<i64: 2, 2, 32>}, {pipeline_mode = #tpu.pipeline_mode<synchronous>, transform_indices = @transform_3, window_bounds = array<i64: 2, 2, 32>}, {pipeline_mode = #tpu.pipeline_mode<synchronous>, transform_indices = @transform_4, window_bounds = array<i64: 160, 128>}, {pipeline_mode = #tpu.pipeline_mode<synchronous>, transform_indices = @transform_5, window_bounds = array<i64: 2, 1, 128>}, {pipeline_mode = #tpu.pipeline_mode<synchronous>, transform_indices = @transform_6, window_bounds = array<i64: 96, 64>}, {pipeline_mode = #tpu.pipeline_mode<synchronous>, transform_indices = @transform_7, window_bounds = array<i64: 1, 64>}, {transform_indices = @transform_8, window_bounds = array<i64: 1, 2, 96>}, {pipeline_mode = #tpu.pipeline_mode<synchronous>, transform_indices = @transform_9, window_bounds = array<i64: 2, 2, 32>}, {pipeline_mode = #tpu.pipeline_mode<synchronous>, transform_indices = @transform_10, window_bounds = array<i64: 2, 2, 32>}]} {
    %c0_i32 = arith.constant 0 : i32
    %0 = arith.cmpi eq, %arg0, %c0_i32 : i32
    %1 = arith.extui %0 : i1 to i32
    %c0_i32_0 = arith.constant 0 : i32
    %2 = arith.cmpi ne, %1, %c0_i32_0 : i32
    scf.if %2 {
      %c0_48 = arith.constant 0 : index
      %c0_49 = arith.constant 0 : index
      %c0_50 = arith.constant 0 : index
      %88 = vector.load %arg3[%c0_48, %c0_49, %c0_50] : memref<2x2x32xf32, #tpu.memory_space<vmem>>, vector<2x2x32xf32>
      %c0_51 = arith.constant 0 : index
      %c0_52 = arith.constant 0 : index
      %c0_53 = arith.constant 0 : index
      %89 = vector.load %arg10[%c0_51, %c0_52, %c0_53] : memref<2x2x32xf32, #tpu.memory_space<vmem>>, vector<2x2x32xf32>
      tpu.vector_store %arg10[%c0_51, %c0_52, %c0_53], %88 {strides = array<i32>} : memref<2x2x32xf32, #tpu.memory_space<vmem>>, vector<2x2x32xf32>,
      %c0_54 = arith.constant 0 : index
      %c0_55 = arith.constant 0 : index
      %c0_56 = arith.constant 0 : index
      %90 = vector.load %arg4[%c0_54, %c0_55, %c0_56] : memref<2x2x32xf32, #tpu.memory_space<vmem>>, vector<2x2x32xf32>
      %c0_57 = arith.constant 0 : index
      %c0_58 = arith.constant 0 : index
      %c0_59 = arith.constant 0 : index
      %91 = vector.load %arg11[%c0_57, %c0_58, %c0_59] : memref<2x2x32xf32, #tpu.memory_space<vmem>>, vector<2x2x32xf32>
      tpu.vector_store %arg11[%c0_57, %c0_58, %c0_59], %90 {strides = array<i32>} : memref<2x2x32xf32, #tpu.memory_space<vmem>>, vector<2x2x32xf32>,
    } else {
    }
    %c0 = arith.constant 0 : index
    %c0_1 = arith.constant 0 : index
    %c0_2 = arith.constant 0 : index
    %3 = vector.load %arg1[%c0, %c0_1, %c0_2] : memref<1x2x32xf32, #tpu.memory_space<vmem>>, vector<1x2x32xf32>
    %4 = vector.shape_cast %3 : vector<1x2x32xf32> to vector<2x32xf32>
    %c0_3 = arith.constant 0 : index
    %c0_4 = arith.constant 0 : index
    %5 = vector.load %arg2[%c0_3, %c0_4] : memref<2x32xf32, #tpu.memory_space<vmem>>, vector<2x32xf32>
    %6 = arith.truncf %4 : vector<2x32xf32> to vector<2x32xbf16>
    %7 = arith.truncf %5 : vector<2x32xf32> to vector<2x32xbf16>
    %c0_5 = arith.constant 0 : index
    %c0_6 = arith.constant 0 : index
    %c0_7 = arith.constant 0 : index
    %8 = vector.load %arg10[%c0_5, %c0_6, %c0_7] : memref<2x2x32xf32, #tpu.memory_space<vmem>>, vector<1x2x32xf32>
    %9 = vector.shape_cast %8 : vector<1x2x32xf32> to vector<2x32xf32>
    %10 = arith.truncf %9 : vector<2x32xf32> to vector<2x32xbf16>
    %11 = tpu.concatenate %6, %7, %10 in 1 : vector<2x32xbf16>, vector<2x32xbf16>, vector<2x32xbf16> -> vector<2x96xbf16>
    %c0_8 = arith.constant 0 : index
    %c0_9 = arith.constant 0 : index
    %12 = vector.load %arg5[%c0_8, %c0_9] : memref<160x128xbf16, #tpu.memory_space<vmem>>, vector<96x128xbf16>
    %cst = arith.constant dense<0.000000e+00> : vector<2x128xf32>
    %13 = tpu.matmul %11, %12, %cst {dimension_numbers = #tpu.dot_dimension_numbers<[1], [0], [0], [1], [0, 0, 1, 1], [], []>} : vector<2x96xbf16>, vector<96x128xbf16>, vector<2x128xf32> -> vector<2x128xf32>
    %c0_10 = arith.constant 0 : index
    %c0_11 = arith.constant 0 : index
    %c0_12 = arith.constant 0 : index
    %14 = vector.load %arg6[%c0_10, %c0_11, %c0_12] : memref<2x1x128xf32, #tpu.memory_space<vmem>>, vector<1x1x128xf32>
    %15 = vector.shape_cast %14 : vector<1x1x128xf32> to vector<1x128xf32>
    %16 = vector.broadcast %15 : vector<1x128xf32> to vector<2x128xf32>
    %17 = arith.addf %13, %16 : vector<2x128xf32>
    %c0_13 = arith.constant 0 : index
    %c0_14 = arith.constant 0 : index
    %c0_15 = arith.constant 0 : index
    %18 = vector.load %arg11[%c0_13, %c0_14, %c0_15] : memref<2x2x32xf32, #tpu.memory_space<vmem>>, vector<1x2x32xf32>
    %19 = vector.shape_cast %18 : vector<1x2x32xf32> to vector<2x32xf32>
    %20 = vector.extract_strided_slice %17 {offsets = [0, 0], sizes = [2, 96], strides = [1, 1]} : vector<2x128xf32> to vector<2x96xf32>
    %21 = arith.negf %20 : vector<2x96xf32>
    %22 = math.exp %21 : vector<2x96xf32>
    %cst_16 = arith.constant 1.000000e+00 : f32
    %23 = vector.broadcast %cst_16 : f32 to vector<2x96xf32>
    %24 = arith.addf %23, %22 : vector<2x96xf32>
    %25 = arith.divf %23, %24 : vector<2x96xf32>
    %26 = vector.extract_strided_slice %25 {offsets = [0, 0], sizes = [2, 32], strides = [1, 1]} : vector<2x96xf32> to vector<2x32xf32>
    %27 = vector.extract_strided_slice %25 {offsets = [0, 32], sizes = [2, 32], strides = [1, 1]} : vector<2x96xf32> to vector<2x32xf32>
    %28 = vector.extract_strided_slice %25 {offsets = [0, 64], sizes = [2, 32], strides = [1, 1]} : vector<2x96xf32> to vector<2x32xf32>
    %29 = vector.extract_strided_slice %17 {offsets = [0, 96], sizes = [2, 32], strides = [1, 1]} : vector<2x128xf32> to vector<2x32xf32>
    %30 = math.tanh %29 : vector<2x32xf32>
    %31 = arith.mulf %27, %19 : vector<2x32xf32>
    %32 = arith.mulf %26, %30 : vector<2x32xf32>
    %33 = arith.addf %31, %32 : vector<2x32xf32>
    %34 = math.tanh %33 : vector<2x32xf32>
    %35 = arith.mulf %28, %34 : vector<2x32xf32>
    %c0_17 = arith.constant 0 : index
    %c0_18 = arith.constant 0 : index
    %c0_19 = arith.constant 0 : index
    %36 = vector.load %arg10[%c0_17, %c0_18, %c0_19] : memref<2x2x32xf32, #tpu.memory_space<vmem>>, vector<1x2x32xf32>
    %37 = vector.shape_cast %36 : vector<1x2x32xf32> to vector<2x32xf32>
    %38 = vector.shape_cast %35 : vector<2x32xf32> to vector<1x2x32xf32>
    tpu.vector_store %arg10[%c0_17, %c0_18, %c0_19], %38 {strides = array<i32>} : memref<2x2x32xf32, #tpu.memory_space<vmem>>, vector<1x2x32xf32>,
    %c0_20 = arith.constant 0 : index
    %c0_21 = arith.constant 0 : index
    %c0_22 = arith.constant 0 : index
    %39 = vector.load %arg11[%c0_20, %c0_21, %c0_22] : memref<2x2x32xf32, #tpu.memory_space<vmem>>, vector<1x2x32xf32>
    %40 = vector.shape_cast %39 : vector<1x2x32xf32> to vector<2x32xf32>
    %41 = vector.shape_cast %33 : vector<2x32xf32> to vector<1x2x32xf32>
    tpu.vector_store %arg11[%c0_20, %c0_21, %c0_22], %41 {strides = array<i32>} : memref<2x2x32xf32, #tpu.memory_space<vmem>>, vector<1x2x32xf32>,
    %42 = arith.truncf %35 : vector<2x32xf32> to vector<2x32xbf16>
    %c1 = arith.constant 1 : index
    %c0_23 = arith.constant 0 : index
    %c0_24 = arith.constant 0 : index
    %43 = vector.load %arg10[%c1, %c0_23, %c0_24] : memref<2x2x32xf32, #tpu.memory_space<vmem>>, vector<1x2x32xf32>
    %44 = vector.shape_cast %43 : vector<1x2x32xf32> to vector<2x32xf32>
    %45 = arith.truncf %44 : vector<2x32xf32> to vector<2x32xbf16>
    %46 = tpu.concatenate %42, %45 in 1 : vector<2x32xbf16>, vector<2x32xbf16> -> vector<2x64xbf16>
    %c96 = arith.constant 96 : index
    %c0_25 = arith.constant 0 : index
    %47 = vector.load %arg5[%c96, %c0_25] : memref<160x128xbf16, #tpu.memory_space<vmem>>, vector<64x128xbf16>
    %cst_26 = arith.constant dense<0.000000e+00> : vector<2x128xf32>
    %48 = tpu.matmul %46, %47, %cst_26 {dimension_numbers = #tpu.dot_dimension_numbers<[1], [0], [0], [1], [0, 0, 1, 1], [], []>} : vector<2x64xbf16>, vector<64x128xbf16>, vector<2x128xf32> -> vector<2x128xf32>
    %c1_27 = arith.constant 1 : index
    %c0_28 = arith.constant 0 : index
    %c0_29 = arith.constant 0 : index
    %49 = vector.load %arg6[%c1_27, %c0_28, %c0_29] : memref<2x1x128xf32, #tpu.memory_space<vmem>>, vector<1x1x128xf32>
    %50 = vector.shape_cast %49 : vector<1x1x128xf32> to vector<1x128xf32>
    %51 = vector.broadcast %50 : vector<1x128xf32> to vector<2x128xf32>
    %52 = arith.addf %48, %51 : vector<2x128xf32>
    %c1_30 = arith.constant 1 : index
    %c0_31 = arith.constant 0 : index
    %c0_32 = arith.constant 0 : index
    %53 = vector.load %arg11[%c1_30, %c0_31, %c0_32] : memref<2x2x32xf32, #tpu.memory_space<vmem>>, vector<1x2x32xf32>
    %54 = vector.shape_cast %53 : vector<1x2x32xf32> to vector<2x32xf32>
    %55 = vector.extract_strided_slice %52 {offsets = [0, 0], sizes = [2, 96], strides = [1, 1]} : vector<2x128xf32> to vector<2x96xf32>
    %56 = arith.negf %55 : vector<2x96xf32>
    %57 = math.exp %56 : vector<2x96xf32>
    %cst_33 = arith.constant 1.000000e+00 : f32
    %58 = vector.broadcast %cst_33 : f32 to vector<2x96xf32>
    %59 = arith.addf %58, %57 : vector<2x96xf32>
    %60 = arith.divf %58, %59 : vector<2x96xf32>
    %61 = vector.extract_strided_slice %60 {offsets = [0, 0], sizes = [2, 32], strides = [1, 1]} : vector<2x96xf32> to vector<2x32xf32>
    %62 = vector.extract_strided_slice %60 {offsets = [0, 32], sizes = [2, 32], strides = [1, 1]} : vector<2x96xf32> to vector<2x32xf32>
    %63 = vector.extract_strided_slice %60 {offsets = [0, 64], sizes = [2, 32], strides = [1, 1]} : vector<2x96xf32> to vector<2x32xf32>
    %64 = vector.extract_strided_slice %52 {offsets = [0, 96], sizes = [2, 32], strides = [1, 1]} : vector<2x128xf32> to vector<2x32xf32>
    %65 = math.tanh %64 : vector<2x32xf32>
    %66 = arith.mulf %62, %54 : vector<2x32xf32>
    %67 = arith.mulf %61, %65 : vector<2x32xf32>
    %68 = arith.addf %66, %67 : vector<2x32xf32>
    %69 = math.tanh %68 : vector<2x32xf32>
    %70 = arith.mulf %63, %69 : vector<2x32xf32>
    %c1_34 = arith.constant 1 : index
    %c0_35 = arith.constant 0 : index
    %c0_36 = arith.constant 0 : index
    %71 = vector.load %arg10[%c1_34, %c0_35, %c0_36] : memref<2x2x32xf32, #tpu.memory_space<vmem>>, vector<1x2x32xf32>
    %72 = vector.shape_cast %71 : vector<1x2x32xf32> to vector<2x32xf32>
    %73 = vector.shape_cast %70 : vector<2x32xf32> to vector<1x2x32xf32>
    tpu.vector_store %arg10[%c1_34, %c0_35, %c0_36], %73 {strides = array<i32>} : memref<2x2x32xf32, #tpu.memory_space<vmem>>, vector<1x2x32xf32>,
    %c1_37 = arith.constant 1 : index
    %c0_38 = arith.constant 0 : index
    %c0_39 = arith.constant 0 : index
    %74 = vector.load %arg11[%c1_37, %c0_38, %c0_39] : memref<2x2x32xf32, #tpu.memory_space<vmem>>, vector<1x2x32xf32>
    %75 = vector.shape_cast %74 : vector<1x2x32xf32> to vector<2x32xf32>
    %76 = vector.shape_cast %68 : vector<2x32xf32> to vector<1x2x32xf32>
    tpu.vector_store %arg11[%c1_37, %c0_38, %c0_39], %76 {strides = array<i32>} : memref<2x2x32xf32, #tpu.memory_space<vmem>>, vector<1x2x32xf32>,
    %77 = arith.truncf %70 : vector<2x32xf32> to vector<2x32xbf16>
    %78 = tpu.concatenate %6, %77, %7 in 1 : vector<2x32xbf16>, vector<2x32xbf16>, vector<2x32xbf16> -> vector<2x96xbf16>
    %c0_40 = arith.constant 0 : index
    %c0_41 = arith.constant 0 : index
    %79 = vector.load %arg7[%c0_40, %c0_41] : memref<96x64xbf16, #tpu.memory_space<vmem>>, vector<96x64xbf16>
    %cst_42 = arith.constant dense<0.000000e+00> : vector<2x64xf32>
    %80 = tpu.matmul %78, %79, %cst_42 {dimension_numbers = #tpu.dot_dimension_numbers<[1], [0], [0], [1], [0, 0, 1, 1], [], []>} : vector<2x96xbf16>, vector<96x64xbf16>, vector<2x64xf32> -> vector<2x64xf32>
    %c0_43 = arith.constant 0 : index
    %c0_44 = arith.constant 0 : index
    %81 = vector.load %arg8[%c0_43, %c0_44] : memref<1x64xf32, #tpu.memory_space<vmem>>, vector<1x64xf32>
    %82 = vector.broadcast %81 : vector<1x64xf32> to vector<2x64xf32>
    %83 = arith.addf %80, %82 : vector<2x64xf32>
    %84 = tpu.concatenate %70, %83 in 1 : vector<2x32xf32>, vector<2x64xf32> -> vector<2x96xf32>
    %c0_45 = arith.constant 0 : index
    %c0_46 = arith.constant 0 : index
    %c0_47 = arith.constant 0 : index
    %85 = vector.load %arg9[%c0_45, %c0_46, %c0_47] : memref<1x2x96xf32, #tpu.memory_space<vmem>>, vector<1x2x96xf32>
    %86 = vector.shape_cast %85 : vector<1x2x96xf32> to vector<2x96xf32>
    %87 = vector.shape_cast %84 : vector<2x96xf32> to vector<1x2x96xf32>
    tpu.vector_store %arg9[%c0_45, %c0_46, %c0_47], %87 {strides = array<i32>} : memref<1x2x96xf32, #tpu.memory_space<vmem>>, vector<1x2x96xf32>,
    return
  }
  func.func @transform_0(%arg0: i32) -> (i32, i32, i32) {
    %c0_i32 = arith.constant 0 : i32
    %c0_i32_0 = arith.constant 0 : i32
    %c0_i32_1 = arith.constant 0 : i32
    return %arg0, %c0_i32, %c0_i32_0 : i32, i32, i32
  }
  func.func @transform_1(%arg0: i32) -> (i32, i32) {
    %c0_i32 = arith.constant 0 : i32
    %c0_i32_0 = arith.constant 0 : i32
    %c0_i32_1 = arith.constant 0 : i32
    return %c0_i32, %c0_i32_0 : i32, i32
  }
  func.func @transform_2(%arg0: i32) -> (i32, i32, i32) {
    %c0_i32 = arith.constant 0 : i32
    %c0_i32_0 = arith.constant 0 : i32
    %c0_i32_1 = arith.constant 0 : i32
    %c0_i32_2 = arith.constant 0 : i32
    return %c0_i32, %c0_i32_0, %c0_i32_1 : i32, i32, i32
  }
  func.func @transform_3(%arg0: i32) -> (i32, i32, i32) {
    %c0_i32 = arith.constant 0 : i32
    %c0_i32_0 = arith.constant 0 : i32
    %c0_i32_1 = arith.constant 0 : i32
    %c0_i32_2 = arith.constant 0 : i32
    return %c0_i32, %c0_i32_0, %c0_i32_1 : i32, i32, i32
  }
  func.func @transform_4(%arg0: i32) -> (i32, i32) {
    %c0_i32 = arith.constant 0 : i32
    %c0_i32_0 = arith.constant 0 : i32
    %c0_i32_1 = arith.constant 0 : i32
    return %c0_i32, %c0_i32_0 : i32, i32
  }
  func.func @transform_5(%arg0: i32) -> (i32, i32, i32) {
    %c0_i32 = arith.constant 0 : i32
    %c0_i32_0 = arith.constant 0 : i32
    %c0_i32_1 = arith.constant 0 : i32
    %c0_i32_2 = arith.constant 0 : i32
    return %c0_i32, %c0_i32_0, %c0_i32_1 : i32, i32, i32
  }
  func.func @transform_6(%arg0: i32) -> (i32, i32) {
    %c0_i32 = arith.constant 0 : i32
    %c0_i32_0 = arith.constant 0 : i32
    %c0_i32_1 = arith.constant 0 : i32
    return %c0_i32, %c0_i32_0 : i32, i32
  }
  func.func @transform_7(%arg0: i32) -> (i32, i32) {
    %c0_i32 = arith.constant 0 : i32
    %c0_i32_0 = arith.constant 0 : i32
    %c0_i32_1 = arith.constant 0 : i32
    return %c0_i32, %c0_i32_0 : i32, i32
  }
  func.func @transform_8(%arg0: i32) -> (i32, i32, i32) {
    %c0_i32 = arith.constant 0 : i32
    %c0_i32_0 = arith.constant 0 : i32
    %c0_i32_1 = arith.constant 0 : i32
    return %arg0, %c0_i32, %c0_i32_0 : i32, i32, i32
  }
  func.func @transform_9(%arg0: i32) -> (i32, i32, i32) {
    %c0_i32 = arith.constant 0 : i32
    %c0_i32_0 = arith.constant 0 : i32
    %c0_i32_1 = arith.constant 0 : i32
    %c0_i32_2 = arith.constant 0 : i32
    return %c0_i32, %c0_i32_0, %c0_i32_1 : i32, i32, i32
  }
  func.func @transform_10(%arg0: i32) -> (i32, i32, i32) {
    %c0_i32 = arith.constant 0 : i32
    %c0_i32_0 = arith.constant 0 : i32
    %c0_i32_1 = arith.constant 0 : i32
    %c0_i32_2 = arith.constant 0 : i32
    return %c0_i32, %c0_i32_0, %c0_i32_1 : i32, i32, i32
  }
}

</mosaic_0001>

<llo_original>
// kernel: conrnn_forward.1
$region0: #{conrnn_forward.1}
  #allocation0 [shape = 'u32[]', space=smem, size = 0x4, offset = 0x4, fixed_abs, tag = 'smem constant byte address 0x4 - core index']
  #allocation1 [shape = 'u32[144,128]{1,0:T(1,128)}', space=vmem, size = 0x12000, scoped, tag = 'internal scratch']
  %s0 = inlined_call_operand.vmem [shape: f32[4,2,32], index: 0, kind: input, shape index: {}]
  %s1 = inlined_call_operand.vmem [shape: f32[2,32], index: 1, kind: input, shape index: {}]
  %s2 = inlined_call_operand.vmem [shape: f32[2,2,32], index: 2, kind: input, shape index: {}, may-alias: {2,9}]
  %s3 = inlined_call_operand.vmem [shape: f32[2,2,32], index: 3, kind: input, shape index: {}, may-alias: {3,10}]
  %s4 = inlined_call_operand.vmem [shape: bf16[160,128], index: 4, kind: input, shape index: {}]
  %s5 = inlined_call_operand.hbm [shape: f32[2,1,128], index: 5, kind: input, shape index: {}]
  %s6 = inlined_call_operand.vmem [shape: bf16[96,64], index: 6, kind: input, shape index: {}]
  %s7 = inlined_call_operand.hbm [shape: f32[1,64], index: 7, kind: input, shape index: {}]
  %s8 = inlined_call_operand.vmem [shape: f32[4,2,96], index: 8, kind: output, shape index: {0}]
  %s9 = inlined_call_operand.vmem [shape: f32[2,2,32], index: 9, kind: output, shape index: {1}, may-alias: {2,9}]
  %s10 = inlined_call_operand.vmem [shape: f32[2,2,32], index: 10, kind: output, shape index: {2}, may-alias: {3,10}]
  %11 = xla_tuple %s8, %s9, %s10
  %s12 = sld [smem:[#allocation0]]
  $region93: #{conrnn_forward.1} parent=0
    _
  %s14 = ssub.s32 1, %s12
  %s15 = scalar_select 0, %s14, %s12
  $region1: #{conrnn_forward.1} parent=0
    #allocation2 [shape = 'u8[1024]{0}', space=vmem, size = 0x400, scoped, tag = 'input window, operand 5, single buffered']
    #allocation3 [shape = 's32[2]{0}', space=sflag, size = 0x8, scoped, tag = 'scoped memory for conrnn_forward.1']
    #allocation4 [shape = 'u8[512]{0}', space=vmem, size = 0x400, scoped, tag = 'input window, operand 7, single buffered']
    #allocation5 [shape = 's32[1]{0}', space=sflag, size = 0x4, scoped, tag = 'scoped memory for conrnn_forward.1']
    %16 = vsyncpa [#allocation3], 0
    %17 = vsyncpa [#allocation5], 0
    loop: start=0, step=1, limit=6
    $region2: #{conrnn_forward.1} parent=1 // loop_pre_header
      _
    $region3: #{conrnn_forward.1} parent=1 // loop_header
      %s19 = sphi 0, %s23
      %p20 = scmp.ge.s32.totalorder %s19, 6
      %s29 = sphi 0, %s31
      %s32 = sphi 0, %s29
      %s33 = sphi 0, %s32
      %s49 = sphi 0, %s33
      %s53 = sphi 0, %s53
      %s55 = sphi 0, %s53
      %s56 = sphi 0, %s55
      %s70 = sphi 0, %s56
      %s74 = sphi 0, %s74
      %s76 = sphi 0, %s74
      %s77 = sphi 0, %s76
      %s91 = sphi 0, %s77
      %s95 = sphi 0, %s95
      %s97 = sphi 0, %s95
      %s98 = sphi 0, %s97
      %s112 = sphi 0, %s98
      %s116 = sphi 0, %s116
      %s118 = sphi 0, %s116
      %s119 = sphi 0, %s118
      %s133 = sphi 0, %s119
      %s137 = sphi 0, %s137
      %s139 = sphi 0, %s137
      %s140 = sphi 0, %s139
      %s154 = sphi 0, %s140
      %s158 = sphi 0, %s158
      %s160 = sphi 0, %s158
      %s161 = sphi 0, %s160
      %s175 = sphi 0, %s161
      %s179 = sphi 0, %s179
      %s181 = sphi 0, %s179
      %s182 = sphi 0, %s181
      %s196 = sphi 0, %s182
      %s202 = sphi 0, %s204
      %s205 = sphi 0, %s202
      %s206 = sphi 0, %s205
      %s222 = sphi 0, %s206
      %s226 = sphi 0, %s226
      %s228 = sphi 0, %s226
      %s229 = sphi 0, %s228
      %s243 = sphi 0, %s229
      %s247 = sphi 0, %s247
      %s249 = sphi 0, %s247
      %s250 = sphi 0, %s249
      %s264 = sphi 0, %s250
    $region4: #{conrnn_forward.1} parent=1 // loop_header_branch
      %22 = sbr.rel (%p20) target = $region8
    $region5: #{conrnn_forward.1} parent=1 // loop_body
      %s24 = ssub.s32 %s19, 1
      %s25 = ssub.s32 %s19, 2
      %s26 = sadd.s32 %s19, 1
      %s27 = ssub.s32 %s19, %s26
      %p28 = scmp.eq.s32.totalorder %s27, 0
      %s30 = sadd.s32 %s29, 1
      %s31 = scalar_select %p28, %s29, %s30
      %p34 = pneg %p28
      %p35 = scmp.eq.s32.totalorder %s19, 3
      %p36 = por %p34, %p35
      %p37 = scmp.ne.s32.totalorder %s29, %s32
      %p38 = scmp.eq.s32.totalorder %s19, 0
      %p39 = por %p37, %p38
      %p40 = scmp.ne.s32.totalorder %s29, %s32
      %p41 = scmp.eq.s32.totalorder %s24, 3
      %p42 = por %p40, %p41
      %p43 = scmp.ne.s32.totalorder %s32, %s33
      %p44 = scmp.eq.s32.totalorder %s24, 0
      %p45 = por %p43, %p44
      %p46 = scmp.ne.s32.totalorder %s32, %s33
      %p47 = scmp.eq.s32.totalorder %s25, 3
      %p48 = por %p46, %p47
      %p50 = scmp.ne.s32.totalorder %s33, %s49
      %p51 = scmp.eq.s32.totalorder %s25, 0
      %p52 = por %p50, %p51
      %s54 = sadd.s32 %s53, 1
      %p57 = scmp.eq.s32.totalorder %s19, 3
      %p58 = scmp.ne.s32.totalorder %s53, %s55
      %p59 = scmp.eq.s32.totalorder %s19, 0
      %p60 = por %p58, %p59
      %p61 = scmp.ne.s32.totalorder %s53, %s55
      %p62 = scmp.eq.s32.totalorder %s24, 3
      %p63 = por %p61, %p62
      %p64 = scmp.ne.s32.totalorder %s55, %s56
      %p65 = scmp.eq.s32.totalorder %s24, 0
      %p66 = por %p64, %p65
      %p67 = scmp.ne.s32.totalorder %s55, %s56
      %p68 = scmp.eq.s32.totalorder %s25, 3
      %p69 = por %p67, %p68
      %p71 = scmp.ne.s32.totalorder %s56, %s70
      %p72 = scmp.eq.s32.totalorder %s25, 0
      %p73 = por %p71, %p72
      %s75 = sadd.s32 %s74, 1
      %p78 = scmp.eq.s32.totalorder %s19, 3
      %p79 = scmp.ne.s32.totalorder %s74, %s76
      %p80 = scmp.eq.s32.totalorder %s19, 0
      %p81 = por %p79, %p80
      %p82 = scmp.ne.s32.totalorder %s74, %s76
      %p83 = scmp.eq.s32.totalorder %s24, 3
      %p84 = por %p82, %p83
      %p85 = scmp.ne.s32.totalorder %s76, %s77
      %p86 = scmp.eq.s32.totalorder %s24, 0
      %p87 = por %p85, %p86
      %p88 = scmp.ne.s32.totalorder %s76, %s77
      %p89 = scmp.eq.s32.totalorder %s25, 3
      %p90 = por %p88, %p89
      %p92 = scmp.ne.s32.totalorder %s77, %s91
      %p93 = scmp.eq.s32.totalorder %s25, 0
      %p94 = por %p92, %p93
      %s96 = sadd.s32 %s95, 1
      %p99 = scmp.eq.s32.totalorder %s19, 3
      %p100 = scmp.ne.s32.totalorder %s95, %s97
      %p101 = scmp.eq.s32.totalorder %s19, 0
      %p102 = por %p100, %p101
      %p103 = scmp.ne.s32.totalorder %s95, %s97
      %p104 = scmp.eq.s32.totalorder %s24, 3
      %p105 = por %p103, %p104
      %p106 = scmp.ne.s32.totalorder %s97, %s98
      %p107 = scmp.eq.s32.totalorder %s24, 0
      %p108 = por %p106, %p107
      %p109 = scmp.ne.s32.totalorder %s97, %s98
      %p110 = scmp.eq.s32.totalorder %s25, 3
      %p111 = por %p109, %p110
      %p113 = scmp.ne.s32.totalorder %s98, %s112
      %p114 = scmp.eq.s32.totalorder %s25, 0
      %p115 = por %p113, %p114
      %s117 = sadd.s32 %s116, 1
      %p120 = scmp.eq.s32.totalorder %s19, 3
      %p121 = scmp.ne.s32.totalorder %s116, %s118
      %p122 = scmp.eq.s32.totalorder %s19, 0
      %p123 = por %p121, %p122
      %p124 = scmp.ne.s32.totalorder %s116, %s118
      %p125 = scmp.eq.s32.totalorder %s24, 3
      %p126 = por %p124, %p125
      %p127 = scmp.ne.s32.totalorder %s118, %s119
      %p128 = scmp.eq.s32.totalorder %s24, 0
      %p129 = por %p127, %p128
      %p130 = scmp.ne.s32.totalorder %s118, %s119
      %p131 = scmp.eq.s32.totalorder %s25, 3
      %p132 = por %p130, %p131
      %p134 = scmp.ne.s32.totalorder %s119, %s133
      %p135 = scmp.eq.s32.totalorder %s25, 0
      %p136 = por %p134, %p135
      %s138 = sadd.s32 %s137, 1
      %p141 = scmp.eq.s32.totalorder %s19, 3
      %p142 = scmp.ne.s32.totalorder %s137, %s139
      %p143 = scmp.eq.s32.totalorder %s19, 0
      %p144 = por %p142, %p143
      %p145 = scmp.ne.s32.totalorder %s137, %s139
      %p146 = scmp.eq.s32.totalorder %s24, 3
      %p147 = por %p145, %p146
      %p148 = scmp.ne.s32.totalorder %s139, %s140
      %p149 = scmp.eq.s32.totalorder %s24, 0
      %p150 = por %p148, %p149
      %p151 = scmp.ne.s32.totalorder %s139, %s140
      %p152 = scmp.eq.s32.totalorder %s25, 3
      %p153 = por %p151, %p152
      %p155 = scmp.ne.s32.totalorder %s140, %s154
      %p156 = scmp.eq.s32.totalorder %s25, 0
      %p157 = por %p155, %p156
      %s159 = sadd.s32 %s158, 1
      %p162 = scmp.eq.s32.totalorder %s19, 3
      %p163 = scmp.ne.s32.totalorder %s158, %s160
      %p164 = scmp.eq.s32.totalorder %s19, 0
      %p165 = por %p163, %p164
      %p166 = scmp.ne.s32.totalorder %s158, %s160
      %p167 = scmp.eq.s32.totalorder %s24, 3
      %p168 = por %p166, %p167
      %p169 = scmp.ne.s32.totalorder %s160, %s161
      %p170 = scmp.eq.s32.totalorder %s24, 0
      %p171 = por %p169, %p170
      %p172 = scmp.ne.s32.totalorder %s160, %s161
      %p173 = scmp.eq.s32.totalorder %s25, 3
      %p174 = por %p172, %p173
      %p176 = scmp.ne.s32.totalorder %s161, %s175
      %p177 = scmp.eq.s32.totalorder %s25, 0
      %p178 = por %p176, %p177
      %s180 = sadd.s32 %s179, 1
      %p183 = scmp.eq.s32.totalorder %s19, 3
      %p184 = scmp.ne.s32.totalorder %s179, %s181
      %p185 = scmp.eq.s32.totalorder %s19, 0
      %p186 = por %p184, %p185
      %p187 = scmp.ne.s32.totalorder %s179, %s181
      %p188 = scmp.eq.s32.totalorder %s24, 3
      %p189 = por %p187, %p188
      %p190 = scmp.ne.s32.totalorder %s181, %s182
      %p191 = scmp.eq.s32.totalorder %s24, 0
      %p192 = por %p190, %p191
      %p193 = scmp.ne.s32.totalorder %s181, %s182
      %p194 = scmp.eq.s32.totalorder %s25, 3
      %p195 = por %p193, %p194
      %p197 = scmp.ne.s32.totalorder %s182, %s196
      %p198 = scmp.eq.s32.totalorder %s25, 0
      %p199 = por %p197, %p198
      %s200 = ssub.s32 %s19, %s26
      %p201 = scmp.eq.s32.totalorder %s200, 0
      %s203 = sadd.s32 %s202, 1
      %s204 = scalar_select %p201, %s202, %s203
      %p207 = pneg %p201
      %p208 = scmp.eq.s32.totalorder %s19, 3
      %p209 = por %p207, %p208
      %p210 = scmp.ne.s32.totalorder %s202, %s205
      %p211 = scmp.eq.s32.totalorder %s19, 0
      %p212 = por %p210, %p211
      %p213 = scmp.ne.s32.totalorder %s202, %s205
      %p214 = scmp.eq.s32.totalorder %s24, 3
      %p215 = por %p213, %p214
      %p216 = scmp.ne.s32.totalorder %s205, %s206
      %p217 = scmp.eq.s32.totalorder %s24, 0
      %p218 = por %p216, %p217
      %p219 = scmp.ne.s32.totalorder %s205, %s206
      %p220 = scmp.eq.s32.totalorder %s25, 3
      %p221 = por %p219, %p220
      %p223 = scmp.ne.s32.totalorder %s206, %s222
      %p224 = scmp.eq.s32.totalorder %s25, 0
      %p225 = por %p223, %p224
      %s227 = sadd.s32 %s226, 1
      %p230 = scmp.eq.s32.totalorder %s19, 3
      %p231 = scmp.ne.s32.totalorder %s226, %s228
      %p232 = scmp.eq.s32.totalorder %s19, 0
      %p233 = por %p231, %p232
      %p234 = scmp.ne.s32.totalorder %s226, %s228
      %p235 = scmp.eq.s32.totalorder %s24, 3
      %p236 = por %p234, %p235
      %p237 = scmp.ne.s32.totalorder %s228, %s229
      %p238 = scmp.eq.s32.totalorder %s24, 0
      %p239 = por %p237, %p238
      %p240 = scmp.ne.s32.totalorder %s228, %s229
      %p241 = scmp.eq.s32.totalorder %s25, 3
      %p242 = por %p240, %p241
      %p244 = scmp.ne.s32.totalorder %s229, %s243
      %p245 = scmp.eq.s32.totalorder %s25, 0
      %p246 = por %p244, %p245
      %s248 = sadd.s32 %s247, 1
      %p251 = scmp.eq.s32.totalorder %s19, 3
      %p252 = scmp.ne.s32.totalorder %s247, %s249
      %p253 = scmp.eq.s32.totalorder %s19, 0
      %p254 = por %p252, %p253
      %p255 = scmp.ne.s32.totalorder %s247, %s249
      %p256 = scmp.eq.s32.totalorder %s24, 3
      %p257 = por %p255, %p256
      %p258 = scmp.ne.s32.totalorder %s249, %s250
      %p259 = scmp.eq.s32.totalorder %s24, 0
      %p260 = por %p258, %p259
      %p261 = scmp.ne.s32.totalorder %s249, %s250
      %p262 = scmp.eq.s32.totalorder %s25, 3
      %p263 = por %p261, %p262
      %p265 = scmp.ne.s32.totalorder %s250, %s264
      %p266 = scmp.eq.s32.totalorder %s25, 0
      %p267 = por %p265, %p266
      %p268 = scmp.le.s32.totalorder 1, %s19
      %p269 = scmp.lt.s32.totalorder %s19, 5
      %p270 = pnand %p268, %p269
      %p271 = pneg %p270
      // Predicated region
      $region9: #{conrnn_forward.1} parent=5 // pred_check
        _
      $region10: #{conrnn_forward.1} parent=5 // pred_check_branch
        %273 = sbr.rel (%p270) target = $region12
      $region11: #{conrnn_forward.1} parent=5 // pred_region
        %s274 = ssub.s32 %s19, 1
        // Predicated region
        $region13: #{conrnn_forward.1} parent=11 // pred_check
          %p275 = pneg %p66
        $region14: #{conrnn_forward.1} parent=11 // pred_check_branch
          %277 = sbr.rel (%p275) target = $region16
        $region15: #{conrnn_forward.1} parent=11 // pred_region
          _
        $region16: #{conrnn_forward.1} parent=11 // pred_fallthru
          _
        // Predicated region
        $region17: #{conrnn_forward.1} parent=11 // pred_check
          %p278 = pneg %p87
        $region18: #{conrnn_forward.1} parent=11 // pred_check_branch
          %280 = sbr.rel (%p278) target = $region20
        $region19: #{conrnn_forward.1} parent=11 // pred_region
          _
        $region20: #{conrnn_forward.1} parent=11 // pred_fallthru
          _
        // Predicated region
        $region21: #{conrnn_forward.1} parent=11 // pred_check
          %p281 = pneg %p108
        $region22: #{conrnn_forward.1} parent=11 // pred_check_branch
          %283 = sbr.rel (%p281) target = $region24
        $region23: #{conrnn_forward.1} parent=11 // pred_region
          _
        $region24: #{conrnn_forward.1} parent=11 // pred_fallthru
          _
        // Predicated region
        $region25: #{conrnn_forward.1} parent=11 // pred_check
          %p284 = pneg %p129
        $region26: #{conrnn_forward.1} parent=11 // pred_check_branch
          %286 = sbr.rel (%p284) target = $region28
        $region27: #{conrnn_forward.1} parent=11 // pred_region
          _
        $region28: #{conrnn_forward.1} parent=11 // pred_fallthru
          _
        // Predicated region
        $region29: #{conrnn_forward.1} parent=11 // pred_check
          %p287 = pneg %p150
        $region30: #{conrnn_forward.1} parent=11 // pred_check_branch
          %289 = sbr.rel (%p287) target = $region32
        $region31: #{conrnn_forward.1} parent=11 // pred_region
          %s291 = ssub.s32 32, 32
          %292 = vsyncadd [#allocation3], %s291
          %s293 = sshll.u32 [#allocation2], 4
          %s294 = int_to_ptr.vmem [resolvable:$true] %s293
          %299 = dma.hbm_to_vmem [thread:$0]  %s5, 32, %s294, [#allocation3], 16, 16, 1
        $region32: #{conrnn_forward.1} parent=11 // pred_fallthru
          _
        // Predicated region
        $region33: #{conrnn_forward.1} parent=11 // pred_check
          %p300 = pneg %p171
        $region34: #{conrnn_forward.1} parent=11 // pred_check_branch
          %302 = sbr.rel (%p300) target = $region36
        $region35: #{conrnn_forward.1} parent=11 // pred_region
          _
        $region36: #{conrnn_forward.1} parent=11 // pred_fallthru
          _
        // Predicated region
        $region37: #{conrnn_forward.1} parent=11 // pred_check
          %p303 = pneg %p192
        $region38: #{conrnn_forward.1} parent=11 // pred_check_branch
          %305 = sbr.rel (%p303) target = $region40
        $region39: #{conrnn_forward.1} parent=11 // pred_region
          %s307 = ssub.s32 16, 16
          %308 = vsyncadd [#allocation5], %s307
          %s310 = sshll.u32 [#allocation4], 4
          %s311 = int_to_ptr.vmem [resolvable:$true] %s310
          %313 = dma.hbm_to_vmem [thread:$0]  %s7, 16, %s311, [#allocation5]
        $region40: #{conrnn_forward.1} parent=11 // pred_fallthru
          _
      $region12: #{conrnn_forward.1} parent=5 // pred_fallthru
        _
      %p314 = scmp.lt.s32.totalorder %s19, 4
      // Predicated region
      $region41: #{conrnn_forward.1} parent=5 // pred_check
        %p315 = pneg %p314
      $region42: #{conrnn_forward.1} parent=5 // pred_check_branch
        %317 = sbr.rel (%p315) target = $region44
      $region43: #{conrnn_forward.1} parent=5 // pred_region
        // Predicated region
        $region45: #{conrnn_forward.1} parent=43 // pred_check
          %p318 = pneg %p39
        $region46: #{conrnn_forward.1} parent=43 // pred_check_branch
          %320 = sbr.rel (%p318) target = $region48
        $region47: #{conrnn_forward.1} parent=43 // pred_region
          %p321 = scmp.lt.s32.totalorder %s19, 3
          %s322 = scalar_select %p321, %s19, 3
          %s323 = smul.addr %s322, 2
          %s324 = scalar_lea.vmem %s0, %s323
        $region48: #{conrnn_forward.1} parent=43 // pred_fallthru
          _
      $region44: #{conrnn_forward.1} parent=5 // pred_fallthru
        _
      %p325 = scmp.le.s32.totalorder 1, %s19
      %p326 = scmp.lt.s32.totalorder %s19, 5
      %p327 = pnand %p325, %p326
      %p328 = pneg %p327
      // Predicated region
      $region49: #{conrnn_forward.1} parent=5 // pred_check
        _
      $region50: #{conrnn_forward.1} parent=5 // pred_check_branch
        %330 = sbr.rel (%p327) target = $region52
      $region51: #{conrnn_forward.1} parent=5 // pred_region
        %s331 = ssub.s32 %s19, 1
        // Predicated region
        $region53: #{conrnn_forward.1} parent=51 // pred_check
          %p332 = pneg %p150
        $region54: #{conrnn_forward.1} parent=51 // pred_check_branch
          %334 = sbr.rel (%p332) target = $region56
        $region55: #{conrnn_forward.1} parent=51 // pred_region
          %335 = dma.done [#allocation3], 32
        $region56: #{conrnn_forward.1} parent=51 // pred_fallthru
          _
        // Predicated region
        $region57: #{conrnn_forward.1} parent=51 // pred_check
          %p336 = pneg %p192
        $region58: #{conrnn_forward.1} parent=51 // pred_check_branch
          %338 = sbr.rel (%p336) target = $region60
        $region59: #{conrnn_forward.1} parent=51 // pred_region
          %339 = dma.done [#allocation5], 16
        $region60: #{conrnn_forward.1} parent=51 // pred_fallthru
          _
        %p340 = scmp.lt.s32.totalorder %s24, 3
        %s341 = scalar_select %p340, %s24, 3
        %s342 = smul.addr %s341, 2
        %s343 = scalar_lea.vmem %s0, %s342
        %p344 = pneg %p45
        %p345 = pneg %p42
        %p346 = pneg %p66
        %p347 = pneg %p63
        %p348 = pneg %p87
        %p349 = pneg %p84
        %p350 = pneg %p108
        %p351 = pneg %p105
        %p352 = pneg %p129
        %p353 = pneg %p126
        %p354 = pneg %p150
        %p355 = pneg %p147
        %p356 = pneg %p171
        %p357 = pneg %p168
        %p358 = pneg %p192
        %p359 = pneg %p189
        %p360 = pneg %p218
        %p361 = pneg %p215
        %p362 = scmp.lt.s32.totalorder %s24, 3
        %s363 = scalar_select %p362, %s24, 3
        %s364 = smul.addr %s363, 2
        %s365 = scalar_lea.vmem %s8, %s364
        %p366 = pneg %p239
        %p367 = pneg %p236
        %p368 = pneg %p260
        %p369 = pneg %p257
        %p370 = scmp.lt.s32.totalorder %s24, 3
        %s371 = scalar_select %p370, %s24, 3
        %s372 = smul.addr %s371, 2
        %s373 = scalar_lea.vmem %s0, %s372
        %p374 = scmp.lt.s32.totalorder %s24, 3
        %s375 = scalar_select %p374, %s24, 3
        %s376 = smul.addr %s375, 2
        %s377 = scalar_lea.vmem %s8, %s376
        %p379 = scmp.eq.s32.totalorder %s24, 0
        // Predicated region
        $region61: #{conrnn_forward.1} parent=51 // pred_check
          %p380 = pneg %p379
        $region62: #{conrnn_forward.1} parent=51 // pred_check_branch
          %382 = sbr.rel (%p380) target = $region64
        $region63: #{conrnn_forward.1} parent=51 // pred_region
          %v383 = vld [vmem:[%s2] sm:$0x3]
          %v384 = vld [vmem:[%s2 + $0x2] sm:$0x3]
          %vm385 = vcmask 254976
          %386 = vst.msk [vmem:[%s9] sm:$0x3] %vm385, %v383
          %387 = vst.msk [vmem:[%s9 + $0x2] sm:$0x3] %vm385, %v384
          %v388 = vld [vmem:[%s3] sm:$0x3]
          %v389 = vld [vmem:[%s3 + $0x2] sm:$0x3]
          %390 = vst.msk [vmem:[%s10] sm:$0x3] %vm385, %v388
          %391 = vst.msk [vmem:[%s10 + $0x2] sm:$0x3] %vm385, %v389
        $region64: #{conrnn_forward.1} parent=51 // pred_fallthru
          _
        %v392 = vld [vmem:[%s373] sm:$0x3]
        %v393 = vld [vmem:[%s1] sm:$0x3]
        %v394 = vpack.c.bf16 %v392, %v392
        %v395 = vpack.c.bf16 %v393, %v393
        %v396 = vld [vmem:[%s9] sm:$0x3]
        %v397 = vpack.c.bf16 %v396, %v396
        %399 = vrot.lane.b32.xlu0 %v395, 32
        %v400 = vpop.permute.xlu0 %399
        %402 = vrot.lane.b32.xlu0 %v397, 64
        %v403 = vpop.permute.xlu0 %402
        %vm404 = vcmask 261120
        %v407 = vsel %vm404, %v394, %v400
        %vm408 = vcmask 523264
        %v410 = vsel %vm408, %v407, %v403
        %v411 = vld [vmem:[%s4] sm:$0xf]
        %v412 = vld [vmem:[%s4 + $0x4] sm:$0xf]
        %v413 = vld [vmem:[%s4 + $0x8] sm:$0xf]
        %v414 = vld [vmem:[%s4 + $0xc] sm:$0xf]
        %v415 = vld [vmem:[%s4 + $0x10] sm:$0xf]
        %v416 = vld [vmem:[%s4 + $0x14] sm:$0xf]
        %v417 = vld [vmem:[%s4 + $0x18] sm:$0xf]
        %v418 = vld [vmem:[%s4 + $0x1c] sm:$0xf]
        %v419 = vld [vmem:[%s4 + $0x20] sm:$0xf]
        %v420 = vld [vmem:[%s4 + $0x24] sm:$0xf]
        %v421 = vld [vmem:[%s4 + $0x28] sm:$0xf]
        %v422 = vld [vmem:[%s4 + $0x2c] sm:$0xf]
        %v423 = vld [vmem:[#allocation2] sm:$0x1]
        %v425 = vlaneseq
        %v426 = vshrl.u32 %v425, 7
        %v427 = vsub.s32 0, %v426
        %v428 = vrot.slane %v423, %v427
        %v442 = vunpack.c.l.b16 %v411
        %v443 = vunpack.c.l.b16 %v412
        %v444 = vunpack.c.l.b16 %v413
        %v445 = vunpack.c.l.b16 %v414
        %v446 = vunpack.c.l.b16 %v415
        %v447 = vunpack.c.l.b16 %v416
        %v448 = vunpack.c.l.b16 %v417
        %v449 = vunpack.c.l.b16 %v418
        %v450 = vunpack.c.l.b16 %v419
        %v451 = vunpack.c.l.b16 %v420
        %v452 = vunpack.c.l.b16 %v421
        %v453 = vunpack.c.l.b16 %v422
        %v454 = vpack.c.b16 %v443, %v442
        %v455 = vpack.c.b16 %v445, %v444
        %v456 = vpack.c.b16 %v447, %v446
        %v457 = vpack.c.b16 %v449, %v448
        %v458 = vpack.c.b16 %v451, %v450
        %v459 = vpack.c.b16 %v453, %v452
        %vm466 = vcmask 785408
        %v467 = vsel %vm466, %v410, 0
        %469 = vmatprep.subr.bf16.mxu0 0
        %470 = vmatpush1.bf16.msra.mxu0 %v454
        %471 = vmatprep.subr.bf16.mxu0 0
        %472 = vmatpush1.bf16.msra.mxu0 %v455
        %473 = vmatprep.subr.bf16.mxu0 0
        %474 = vmatpush1.bf16.msra.mxu0 %v456
        %475 = vmatprep.subr.bf16.mxu0 0
        %476 = vmatpush1.bf16.msra.mxu0 %v457
        %477 = vmatprep.subr.bf16.mxu0 0
        %478 = vmatpush1.bf16.msra.mxu0 %v458
        %479 = vmatprep.subr.bf16.mxu0 0
        %480 = vmatpush1.bf16.msra.mxu0 %v459
        %481 = vmatprep.subr.bf16.mxu0 0
        %482 = vmatpush1.bf16.msra.mxu0 0
        %483 = vmatprep.subr.bf16.mxu0 0
        %484 = vmatpush1.bf16.msra.mxu0 0
        %485 = vmatprep.subr.bf16.mxu0 0
        %486 = vmatpush1.bf16.msra.mxu0 0
        %487 = vmatprep.subr.bf16.mxu0 0
        %488 = vmatpush1.bf16.msra.mxu0 0
        %489 = vmatprep.subr.bf16.mxu0 0
        %490 = vmatpush1.bf16.msra.mxu0 0
        %491 = vmatprep.subr.bf16.mxu0 0
        %492 = vmatpush1.bf16.msra.mxu0 0
        %493 = vmatprep.subr.bf16.mxu0 0
        %494 = vmatpush1.bf16.msra.mxu0 0
        %495 = vmatprep.subr.bf16.mxu0 0
        %496 = vmatpush1.bf16.msra.mxu0 0
        %497 = vmatprep.subr.bf16.mxu0 0
        %498 = vmatpush1.bf16.msra.mxu0 0
        %499 = vmatprep.subr.bf16.mxu0 0
        %500 = vmatpush1.bf16.msra.mxu0 0
        %501 = vmatprep.mubr.bf16.mxu0 0
        %502 = vmatmul.mubr.bf16.gmra.mrb[0].mxu0 %v467
        %v503 = vpop.f32.mrb[0].mxu0
        %v504 = vadd.f32 %v428, %v503
        %v505 = vpop.f32.mrb[0].mxu0
        %v506 = vpop.f32.mrb[0].mxu0
        %v507 = vpop.f32.mrb[0].mxu0
        %508 = vdwg.mxu0
        %v509 = vld [vmem:[%s10] sm:$0x3]
        %v510 = vxor.u32 %v504, 2147483648
        %v511 = vmul.f32 %v510, 1.442695
        %v512 = vpow.pop %v511
        %v513 = vadd.f32 %v512, 1.0
        %v514 = vrcp.pop %v513
        %v515 = vmul.f32 1.0, %v514
        %v516 = vtanh.pop %v504
        %518 = vrot.lane.b32.xlu0 %v509, 32
        %v519 = vpop.permute.xlu0 %518
        %v521 = vmul.f32 %v515, %v519
        %523 = vrot.lane.b32.xlu0 %v516, 32
        %v524 = vpop.permute.xlu0 %523
        %v526 = vmul.f32 %v515, %v524
        %528 = vrot.lane.b32.xlu0 %v526, 32
        %v529 = vpop.permute.xlu0 %528
        %v531 = vadd.f32 %v521, %v529
        %v532 = vtanh.pop %v531
        %534 = vrot.lane.b32.xlu0 %v532, 32
        %v535 = vpop.permute.xlu0 %534
        %v537 = vmul.f32 %v515, %v535
        %539 = vrot.lane.b32.xlu0 %v537, 64
        %v540 = vpop.permute.xlu0 %539
        %vm542 = vcmask 254976
        %543 = vst.msk [vmem:[%s9] sm:$0x3] %vm542, %v540
        %545 = vrot.lane.b32.xlu0 %v531, 96
        %v546 = vpop.permute.xlu0 %545
        %548 = vst.msk [vmem:[%s10] sm:$0x3] %vm542, %v546
        %v549 = vpack.c.bf16 %v537, %v537
        %s550 = scalar_lea.vmem %s9, 2
        %v551 = vld [vmem:[%s550] sm:$0x3]
        %v552 = vpack.c.bf16 %v551, %v551
        %554 = vrot.lane.b32.xlu0 %v549, 64
        %v555 = vpop.permute.xlu0 %554
        %557 = vrot.lane.b32.xlu0 %v552, 32
        %v558 = vpop.permute.xlu0 %557
        %v561 = vsel %vm404, %v555, %v558
        %v562 = vld [vmem:[%s4 + $0x30] sm:$0xf]
        %v563 = vld [vmem:[%s4 + $0x34] sm:$0xf]
        %v564 = vld [vmem:[%s4 + $0x38] sm:$0xf]
        %v565 = vld [vmem:[%s4 + $0x3c] sm:$0xf]
        %v566 = vld [vmem:[%s4 + $0x40] sm:$0xf]
        %v567 = vld [vmem:[%s4 + $0x44] sm:$0xf]
        %v568 = vld [vmem:[%s4 + $0x48] sm:$0xf]
        %v569 = vld [vmem:[%s4 + $0x4c] sm:$0xf]
        %s570 = scalar_lea.vmem [#allocation2], 1
        %v571 = vld [vmem:[%s570] sm:$0x1]
        %v573 = vlaneseq
        %v574 = vshrl.u32 %v573, 7
        %v575 = vsub.s32 0, %v574
        %v576 = vrot.slane %v571, %v575
        %v586 = vunpack.c.l.b16 %v562
        %v587 = vunpack.c.l.b16 %v563
        %v588 = vunpack.c.l.b16 %v564
        %v589 = vunpack.c.l.b16 %v565
        %v590 = vunpack.c.l.b16 %v566
        %v591 = vunpack.c.l.b16 %v567
        %v592 = vunpack.c.l.b16 %v568
        %v593 = vunpack.c.l.b16 %v569
        %v594 = vpack.c.b16 %v587, %v586
        %v595 = vpack.c.b16 %v589, %v588
        %v596 = vpack.c.b16 %v591, %v590
        %v597 = vpack.c.b16 %v593, %v592
        %v602 = vsel %vm408, %v561, 0
        %604 = vmatprep.subr.bf16.mxu0 0
        %605 = vmatpush1.bf16.msra.mxu0 %v594
        %606 = vmatprep.subr.bf16.mxu0 0
        %607 = vmatpush1.bf16.msra.mxu0 %v595
        %608 = vmatprep.subr.bf16.mxu0 0
        %609 = vmatpush1.bf16.msra.mxu0 %v596
        %610 = vmatprep.subr.bf16.mxu0 0
        %611 = vmatpush1.bf16.msra.mxu0 %v597
        %612 = vmatprep.subr.bf16.mxu0 0
        %613 = vmatpush1.bf16.msra.mxu0 0
        %614 = vmatprep.subr.bf16.mxu0 0
        %615 = vmatpush1.bf16.msra.mxu0 0
        %616 = vmatprep.subr.bf16.mxu0 0
        %617 = vmatpush1.bf16.msra.mxu0 0
        %618 = vmatprep.subr.bf16.mxu0 0
        %619 = vmatpush1.bf16.msra.mxu0 0
        %620 = vmatprep.subr.bf16.mxu0 0
        %621 = vmatpush1.bf16.msra.mxu0 0
        %622 = vmatprep.subr.bf16.mxu0 0
        %623 = vmatpush1.bf16.msra.mxu0 0
        %624 = vmatprep.subr.bf16.mxu0 0
        %625 = vmatpush1.bf16.msra.mxu0 0
        %626 = vmatprep.subr.bf16.mxu0 0
        %627 = vmatpush1.bf16.msra.mxu0 0
        %628 = vmatprep.subr.bf16.mxu0 0
        %629 = vmatpush1.bf16.msra.mxu0 0
        %630 = vmatprep.subr.bf16.mxu0 0
        %631 = vmatpush1.bf16.msra.mxu0 0
        %632 = vmatprep.subr.bf16.mxu0 0
        %633 = vmatpush1.bf16.msra.mxu0 0
        %634 = vmatprep.subr.bf16.mxu0 0
        %635 = vmatpush1.bf16.msra.mxu0 0
        %636 = vmatprep.mubr.bf16.mxu0 0
        %637 = vmatmul.mubr.bf16.gmra.mrb[0].mxu0 %v602
        %v638 = vpop.f32.mrb[0].mxu0
        %v639 = vadd.f32 %v576, %v638
        %v640 = vpop.f32.mrb[0].mxu0
        %v641 = vpop.f32.mrb[0].mxu0
        %v642 = vpop.f32.mrb[0].mxu0
        %643 = vdwg.mxu0
        %s644 = scalar_lea.vmem %s10, 2
        %v645 = vld [vmem:[%s644] sm:$0x3]
        %v646 = vxor.u32 %v639, 2147483648
        %v647 = vmul.f32 %v646, 1.442695
        %v648 = vpow.pop %v647
        %v649 = vadd.f32 %v648, 1.0
        %v650 = vrcp.pop %v649
        %v651 = vmul.f32 1.0, %v650
        %v652 = vtanh.pop %v639
        %654 = vrot.lane.b32.xlu0 %v645, 32
        %v655 = vpop.permute.xlu0 %654
        %v657 = vmul.f32 %v651, %v655
        %659 = vrot.lane.b32.xlu0 %v652, 32
        %v660 = vpop.permute.xlu0 %659
        %v662 = vmul.f32 %v651, %v660
        %664 = vrot.lane.b32.xlu0 %v662, 32
        %v665 = vpop.permute.xlu0 %664
        %v667 = vadd.f32 %v657, %v665
        %v668 = vtanh.pop %v667
        %670 = vrot.lane.b32.xlu0 %v668, 32
        %v671 = vpop.permute.xlu0 %670
        %v673 = vmul.f32 %v651, %v671
        %675 = vrot.lane.b32.xlu0 %v673, 64
        %v676 = vpop.permute.xlu0 %675
        %678 = vst.msk [vmem:[%s550] sm:$0x3] %vm542, %v676
        %680 = vrot.lane.b32.xlu0 %v667, 96
        %v681 = vpop.permute.xlu0 %680
        %683 = vst.msk [vmem:[%s644] sm:$0x3] %vm542, %v681
        %v684 = vpack.c.bf16 %v673, %v673
        %686 = vrot.lane.b32.xlu0 %v684, 96
        %v687 = vpop.permute.xlu0 %686
        %688 = vrot.lane.b32.xlu0 %v395, 64
        %v689 = vpop.permute.xlu0 %688
        %v691 = vsel %vm404, %v394, %v687
        %v693 = vsel %vm408, %v691, %v689
        %v694 = vld [vmem:[%s6] sm:$0xf]
        %v695 = vld [vmem:[%s6 + $0x4] sm:$0xf]
        %v696 = vld [vmem:[%s6 + $0x8] sm:$0xf]
        %v697 = vld [vmem:[%s6 + $0xc] sm:$0xf]
        %v698 = vld [vmem:[%s6 + $0x10] sm:$0xf]
        %v699 = vld [vmem:[%s6 + $0x14] sm:$0xf]
        %v700 = vld [vmem:[%s6 + $0x18] sm:$0xf]
        %v701 = vld [vmem:[%s6 + $0x1c] sm:$0xf]
        %v702 = vld [vmem:[%s6 + $0x20] sm:$0xf]
        %v703 = vld [vmem:[%s6 + $0x24] sm:$0xf]
        %v704 = vld [vmem:[%s6 + $0x28] sm:$0xf]
        %v705 = vld [vmem:[%s6 + $0x2c] sm:$0xf]
        %v706 = vld [vmem:[#allocation4] sm:$0x1]
        %v708 = vlaneseq
        %v709 = vshrl.u32 %v708, 7
        %v710 = vsub.s32 0, %v709
        %v711 = vrot.slane %v706, %v710
        %v725 = vunpack.c.l.b16 %v694
        %v726 = vunpack.c.l.b16 %v695
        %v727 = vunpack.c.l.b16 %v696
        %v728 = vunpack.c.l.b16 %v697
        %v729 = vunpack.c.l.b16 %v698
        %v730 = vunpack.c.l.b16 %v699
        %v731 = vunpack.c.l.b16 %v700
        %v732 = vunpack.c.l.b16 %v701
        %v733 = vunpack.c.l.b16 %v702
        %v734 = vunpack.c.l.b16 %v703
        %v735 = vunpack.c.l.b16 %v704
        %v736 = vunpack.c.l.b16 %v705
        %v737 = vpack.c.b16 %v726, %v725
        %v738 = vpack.c.b16 %v728, %v727
        %v739 = vpack.c.b16 %v730, %v729
        %v740 = vpack.c.b16 %v732, %v731
        %v741 = vpack.c.b16 %v734, %v733
        %v742 = vpack.c.b16 %v736, %v735
        %v749 = vsel %vm466, %v693, 0
        %751 = vmatprep.subr.bf16.mxu0 0
        %752 = vmatpush1.bf16.msra.mxu0 %v737
        %753 = vmatprep.subr.bf16.mxu0 0
        %754 = vmatpush1.bf16.msra.mxu0 %v738
        %755 = vmatprep.subr.bf16.mxu0 0
        %756 = vmatpush1.bf16.msra.mxu0 %v739
        %757 = vmatprep.subr.bf16.mxu0 0
        %758 = vmatpush1.bf16.msra.mxu0 %v740
        %759 = vmatprep.subr.bf16.mxu0 0
        %760 = vmatpush1.bf16.msra.mxu0 %v741
        %761 = vmatprep.subr.bf16.mxu0 0
        %762 = vmatpush1.bf16.msra.mxu0 %v742
        %763 = vmatprep.subr.bf16.mxu0 0
        %764 = vmatpush1.bf16.msra.mxu0 0
        %765 = vmatprep.subr.bf16.mxu0 0
        %766 = vmatpush1.bf16.msra.mxu0 0
        %767 = vmatprep.subr.bf16.mxu0 0
        %768 = vmatpush1.bf16.msra.mxu0 0
        %769 = vmatprep.subr.bf16.mxu0 0
        %770 = vmatpush1.bf16.msra.mxu0 0
        %771 = vmatprep.subr.bf16.mxu0 0
        %772 = vmatpush1.bf16.msra.mxu0 0
        %773 = vmatprep.subr.bf16.mxu0 0
        %774 = vmatpush1.bf16.msra.mxu0 0
        %775 = vmatprep.subr.bf16.mxu0 0
        %776 = vmatpush1.bf16.msra.mxu0 0
        %777 = vmatprep.subr.bf16.mxu0 0
        %778 = vmatpush1.bf16.msra.mxu0 0
        %779 = vmatprep.subr.bf16.mxu0 0
        %780 = vmatpush1.bf16.msra.mxu0 0
        %781 = vmatprep.subr.bf16.mxu0 0
        %782 = vmatpush1.bf16.msra.mxu0 0
        %783 = vmatprep.mubr.bf16.mxu0 0
        %784 = vmatmul.mubr.bf16.gmra.mrb[0].mxu0 %v749
        %v785 = vpop.f32.mrb[0].mxu0
        %v786 = vadd.f32 %v711, %v785
        %v787 = vpop.f32.mrb[0].mxu0
        %v788 = vpop.f32.mrb[0].mxu0
        %v789 = vpop.f32.mrb[0].mxu0
        %790 = vdwg.mxu0
        %792 = vrot.lane.b32.xlu0 %v786, 32
        %v793 = vpop.permute.xlu0 %792
        %v795 = vsel %vm404, %v676, %v793
        %vm796 = vcmask 779264
        %797 = vst.msk [vmem:[%s377] sm:$0x3] %vm796, %v795
        %p798 = scmp.lt.s32.totalorder %s24, 3
        %s799 = scalar_select %p798, %s24, 3
        %s800 = smul.addr %s799, 2
        %s801 = scalar_lea.vmem %s8, %s800
        // Predicated region
        $region65: #{conrnn_forward.1} parent=51 // pred_check
          %p802 = pneg %p215
        $region66: #{conrnn_forward.1} parent=51 // pred_check_branch
          %804 = sbr.rel (%p802) target = $region68
        $region67: #{conrnn_forward.1} parent=51 // pred_region
          _
        $region68: #{conrnn_forward.1} parent=51 // pred_fallthru
          _
        // Predicated region
        $region69: #{conrnn_forward.1} parent=51 // pred_check
          %p805 = pneg %p236
        $region70: #{conrnn_forward.1} parent=51 // pred_check_branch
          %807 = sbr.rel (%p805) target = $region72
        $region71: #{conrnn_forward.1} parent=51 // pred_region
          _
        $region72: #{conrnn_forward.1} parent=51 // pred_fallthru
          _
        // Predicated region
        $region73: #{conrnn_forward.1} parent=51 // pred_check
          %p808 = pneg %p257
        $region74: #{conrnn_forward.1} parent=51 // pred_check_branch
          %810 = sbr.rel (%p808) target = $region76
        $region75: #{conrnn_forward.1} parent=51 // pred_region
          _
        $region76: #{conrnn_forward.1} parent=51 // pred_fallthru
          _
        // Predicated region
        $region77: #{conrnn_forward.1} parent=51 // pred_check
          %p811 = pneg %p236
        $region78: #{conrnn_forward.1} parent=51 // pred_check_branch
          %813 = sbr.rel (%p811) target = $region80
        $region79: #{conrnn_forward.1} parent=51 // pred_region
          _
        $region80: #{conrnn_forward.1} parent=51 // pred_fallthru
          _
        // Predicated region
        $region81: #{conrnn_forward.1} parent=51 // pred_check
          %p814 = pneg %p257
        $region82: #{conrnn_forward.1} parent=51 // pred_check_branch
          %816 = sbr.rel (%p814) target = $region84
        $region83: #{conrnn_forward.1} parent=51 // pred_region
          _
        $region84: #{conrnn_forward.1} parent=51 // pred_fallthru
          _
      $region52: #{conrnn_forward.1} parent=5 // pred_fallthru
        _
      %p817 = scmp.le.s32.totalorder 2, %s19
      // Predicated region
      $region85: #{conrnn_forward.1} parent=5 // pred_check
        %p818 = pneg %p817
      $region86: #{conrnn_forward.1} parent=5 // pred_check_branch
        %820 = sbr.rel (%p818) target = $region88
      $region87: #{conrnn_forward.1} parent=5 // pred_region
        %s821 = ssub.s32 %s19, 2
        // Predicated region
        $region89: #{conrnn_forward.1} parent=87 // pred_check
          %p822 = pneg %p221
        $region90: #{conrnn_forward.1} parent=87 // pred_check_branch
          %824 = sbr.rel (%p822) target = $region92
        $region91: #{conrnn_forward.1} parent=87 // pred_region
          %p825 = scmp.lt.s32.totalorder %s25, 3
          %s826 = scalar_select %p825, %s25, 3
          %s827 = smul.addr %s826, 2
          %s828 = scalar_lea.vmem %s8, %s827
        $region92: #{conrnn_forward.1} parent=87 // pred_fallthru
          _
      $region88: #{conrnn_forward.1} parent=5 // pred_fallthru
        _
    $region6: #{conrnn_forward.1} parent=1 // loop_footer
      %s23 = sadd.s32 1, %s19
    $region7: #{conrnn_forward.1} parent=1 // loop_footer_branch
      %18 = sbr.rel target = $region3
    $region8: #{conrnn_forward.1} parent=1 // loop_exit
      _
    %829 = vsyncpa [#allocation3], 1
    %s830 = scalar_lea.sflag [#allocation3], 1
    %831 = vsyncpa %s830, 1
    %832 = vsyncpa [#allocation5], 1

</llo_original>
